<compile_context>
chip_gen: v7x
topology: tpu7x:2x2x1
jax: 0.10.0
libtpu: 0.0.40
codegen_flags: <defaults>
</compile_context>

<pallas_src>
import functools
import numpy as np

import jax
import jax.numpy as jnp
from jax.experimental import pallas as pl
from jax.experimental.pallas import tpu as pltpu

_VMEM_LIMIT = 32 * 1024 * 1024


def _cp(sems):
    return pltpu.CompilerParams(dimension_semantics=sems,
                                vmem_limit_bytes=_VMEM_LIMIT)


def _round_up(x, m):
    return ((x + m - 1) // m) * m


def _pad_rows(a, rows_p, fill=0):
    pad = rows_p - a.shape[0]
    if pad == 0:
        return a
    cfg = [(0, pad)] + [(0, 0)] * (a.ndim - 1)
    return jnp.pad(a, cfg, constant_values=fill)


# ----------------------------------------------------------------------------
# Fused MLP kernel: pack parts in VMEM -> [Linear -> LN -> ReLU]* -> (+res/L2)
# ----------------------------------------------------------------------------
def _fused_mlp_kernel(*refs, n_parts, n_layers, ln, out_act, has_res, l2_out):
    it = iter(refs)
    part_refs = [next(it) for _ in range(n_parts)]
    res_ref = next(it) if has_res else None
    layer_refs = [tuple(next(it) for _ in range(4)) for _ in range(n_layers)]
    o_ref = next(it)
    xcat_ref = next(it) if n_parts > 1 else None

    # Pack the input parts into one contiguous VMEM buffer so layer 0 is a
    # single full-K dot (instead of n_parts dots with tiny K).
    if n_parts > 1:
        off = 0
        for p in part_refs:
            dp = p.shape[1]
            xcat_ref[:, off:off + dp] = p[...].astype(jnp.float32)
            off += dp
        x = xcat_ref[...].astype(jnp.bfloat16)
    else:
        x = part_refs[0][...].astype(jnp.bfloat16)

    y = None
    for li, (w_ref, b_ref, g_ref, bt_ref) in enumerate(layer_refs):
        last = li == n_layers - 1
        y = jnp.dot(x, w_ref[...], preferred_element_type=jnp.float32)
        y = y + b_ref[...]
        # make_mlp: final layer gets LN/activation only if output_activation set
        do_ln = ln and (out_act if last else True)
        do_act = out_act if last else True
        if do_ln:
            mu = jnp.mean(y, axis=-1, keepdims=True)
            var = jnp.mean(jnp.square(y - mu), axis=-1, keepdims=True)
            y = (y - mu) * jax.lax.rsqrt(var + 1e-5)
            y = y * g_ref[...] + bt_ref[...]
        if do_act:
            y = jnp.maximum(y, 0.0)  # ReLU
        if not last:
            x = y.astype(jnp.bfloat16)  # hold inter-layer activation in bf16

    if has_res:
        y = y + res_ref[...].astype(jnp.float32)
    if l2_out:
        ss = jnp.sum(y * y, axis=-1, keepdims=True)
        y = y * jax.lax.rsqrt(jnp.maximum(ss, 1e-24))  # == F.normalize(eps=1e-12)
    o_ref[...] = y.astype(o_ref.dtype)


def fused_mlp(parts, layers, *, ln, out_act, residual=None, l2_out=False,
              out_dtype=jnp.float32, row_tile=512):
    """One pallas_call for a whole MLP (input concat, LN, ReLU, residual, L2)."""
    parts = [jnp.asarray(p) for p in parts]
    rows = parts[0].shape[0]
    n_parts = len(parts)
    n_layers = len(layers)
    d_out = layers[-1][0].shape[1]
    d_in = sum(p.shape[1] for p in parts)

    tm = min(row_tile, _round_up(rows, 8))
    rows_p = _round_up(rows, tm)

    inputs, in_specs = [], []
    for pt in parts:
        inputs.append(_pad_rows(pt, rows_p))
        in_specs.append(pl.BlockSpec((tm, pt.shape[1]), lambda i: (i, 0)))
    has_res = residual is not None
    if has_res:
        inputs.append(_pad_rows(jnp.asarray(residual), rows_p))
        in_specs.append(pl.BlockSpec((tm, d_out), lambda i: (i, 0)))

    def full_spec(a):
        return pl.BlockSpec(a.shape, lambda i: (0, 0))

    for (w, b, g, bt) in layers:
        for a in (w, b, g, bt):
            inputs.append(a)
            in_specs.append(full_spec(a))

    scratch = []
    if n_parts > 1:
        scratch.append(pltpu.VMEM((tm, d_in), jnp.float32))

    kernel = functools.partial(
        _fused_mlp_kernel, n_parts=n_parts, n_layers=n_layers, ln=ln,
        out_act=out_act, has_res=has_res, l2_out=l2_out)
    out = pl.pallas_call(
        kernel,
        out_shape=jax.ShapeDtypeStruct((rows_p, d_out), out_dtype),
        grid=(rows_p // tm,),
        in_specs=in_specs,
        out_specs=pl.BlockSpec((tm, d_out), lambda i: (i, 0)),
        scratch_shapes=scratch,
        compiler_params=_cp(("parallel",)),
    )(*inputs)
    return out[:rows] if rows_p != rows else out


# ----------------------------------------------------------------------------
# Scatter kernels: destination-tiled grid, f32 scratch accumulator, in-kernel
# one-hot (no [E, C] one-hot in HBM), fused source gather where needed.
# ----------------------------------------------------------------------------
def _gather_scatter_kernel(sidx_ref, didx_ref, w_ref, table_ref, o_ref, acc_ref):
    e_id = pl.program_id(1)

    @pl.when(e_id == 0)
    def _init():
        acc_ref[...] = jnp.zeros_like(acc_ref)

    te = sidx_ref.shape[0]
    n_src = table_ref.shape[0]
    tc = acc_ref.shape[0]
    # fused gather: table[src_idx] via one-hot matmul (padded idx=-1 -> zeros)
    src_iota = jax.lax.broadcasted_iota(jnp.int32, (te, n_src), 1)
    oh_src = (sidx_ref[...] == src_iota).astype(jnp.bfloat16)
    gathered = jnp.dot(oh_src, table_ref[...].astype(jnp.bfloat16),
                       preferred_element_type=jnp.float32)
    msg = (gathered * w_ref[...]).astype(jnp.bfloat16)
    # scatter into this destination tile
    c0 = pl.program_id(0) * tc
    dst_iota = jax.lax.broadcasted_iota(jnp.int32, (te, tc), 1) + c0
    oh_dst = (didx_ref[...] == dst_iota).astype(jnp.bfloat16)
    acc_ref[...] += jax.lax.dot_general(
        oh_dst, msg, (((0,), (0,)), ((), ())), preferred_element_type=jnp.float32)

    @pl.when(e_id == pl.num_programs(1) - 1)
    def _fin():
        o_ref[...] = acc_ref[...].astype(o_ref.dtype)


def pallas_gather_scatter(table, src_idx, dst_idx, weights, dim_size,
                          out_dtype=jnp.bfloat16, row_tile=1024, dst_tile=512):
    """out[dst_idx[e]] += weights[e] * table[src_idx[e]]  (gather fused in-kernel)."""
    # TODO(synk): table is held as one full VMEM block; tile its rows for very large N.
    e = src_idx.shape[0]
    f = table.shape[1]
    te = min(row_tile, _round_up(e, 8))
    ep = _round_up(e, te)
    tc = min(dst_tile, _round_up(dim_size, 8))
    cp = _round_up(dim_size, tc)
    sidx = _pad_rows(src_idx.astype(jnp.int32)[:, None], ep, fill=-1)
    didx = _pad_rows(dst_idx.astype(jnp.int32)[:, None], ep, fill=-1)
    w_p = _pad_rows(weights.astype(jnp.float32), ep)
    out = pl.pallas_call(
        _gather_scatter_kernel,
        out_shape=jax.ShapeDtypeStruct((cp, f), out_dtype),
        grid=(cp // tc, ep // te),
        in_specs=[pl.BlockSpec((te, 1), lambda c, r: (r, 0)),
                  pl.BlockSpec((te, 1), lambda c, r: (r, 0)),
                  pl.BlockSpec((te, 1), lambda c, r: (r, 0)),
                  pl.BlockSpec(table.shape, lambda c, r: (0, 0))],
        out_specs=pl.BlockSpec((tc, f), lambda c, r: (c, 0)),
        scratch_shapes=[pltpu.VMEM((tc, f), jnp.float32)],
        compiler_params=_cp(("parallel", "arbitrary")),
    )(sidx, didx, w_p, table)
    return out[:dim_size]


def _weighted_scatter_kernel(idx_ref, msg_ref, w_ref, o_ref, acc_ref):
    e_id = pl.program_id(1)

    @pl.when(e_id == 0)
    def _init():
        acc_ref[...] = jnp.zeros_like(acc_ref)

    te = idx_ref.shape[0]
    tc = acc_ref.shape[0]
    c0 = pl.program_id(0) * tc
    iota = jax.lax.broadcasted_iota(jnp.int32, (te, tc), 1) + c0
    onehot = (idx_ref[...] == iota).astype(jnp.bfloat16)
    m = (msg_ref[...] * w_ref[...]).astype(jnp.bfloat16)
    acc_ref[...] += jax.lax.dot_general(
        onehot, m, (((0,), (0,)), ((), ())), preferred_element_type=jnp.float32)

    @pl.when(e_id == pl.num_programs(1) - 1)
    def _fin():
        o_ref[...] = acc_ref[...].astype(o_ref.dtype)


def pallas_weighted_scatter(index, msg, weights, dim_size,
                            out_dtype=jnp.bfloat16, row_tile=1024, dst_tile=512):
    """scatter_add(msg * weights, index, dim_size) without an HBM one-hot."""
    e, f = msg.shape
    te = min(row_tile, _round_up(e, 8))
    ep = _round_up(e, te)
    tc = min(dst_tile, _round_up(dim_size, 8))
    cp = _round_up(dim_size, tc)
    idx = _pad_rows(index.astype(jnp.int32)[:, None], ep, fill=-1)
    msg_p = _pad_rows(msg, ep)
    w_p = _pad_rows(weights.astype(jnp.float32), ep)
    out = pl.pallas_call(
        _weighted_scatter_kernel,
        out_shape=jax.ShapeDtypeStruct((cp, f), out_dtype),
        grid=(cp // tc, ep // te),
        in_specs=[pl.BlockSpec((te, 1), lambda c, r: (r, 0)),
                  pl.BlockSpec((te, f), lambda c, r: (r, 0)),
                  pl.BlockSpec((te, 1), lambda c, r: (r, 0))],
        out_specs=pl.BlockSpec((tc, f), lambda c, r: (c, 0)),
        scratch_shapes=[pltpu.VMEM((tc, f), jnp.float32)],
        compiler_params=_cp(("parallel", "arbitrary")),
    )(idx, msg_p, w_p)
    return out[:dim_size]


def _bidir_scatter_kernel(idx0_ref, idx1_ref, msg_ref, o_ref, acc_ref):
    e_id = pl.program_id(1)

    @pl.when(e_id == 0)
    def _init():
        acc_ref[...] = jnp.zeros_like(acc_ref)

    te = idx0_ref.shape[0]
    tc = acc_ref.shape[0]
    c0 = pl.program_id(0) * tc
    iota = jax.lax.broadcasted_iota(jnp.int32, (te, tc), 1) + c0
    onehot = ((idx0_ref[...] == iota).astype(jnp.bfloat16)
              + (idx1_ref[...] == iota).astype(jnp.bfloat16))
    m = msg_ref[...].astype(jnp.bfloat16)
    acc_ref[...] += jax.lax.dot_general(
        onehot, m, (((0,), (0,)), ((), ())), preferred_element_type=jnp.float32)

    @pl.when(e_id == pl.num_programs(1) - 1)
    def _fin():
        o_ref[...] = acc_ref[...].astype(o_ref.dtype)


def pallas_scatter_bidir(msg, idx0, idx1, dim_size,
                         out_dtype=jnp.bfloat16, row_tile=1024, dst_tile=512):
    """scatter_add(msg, idx0) + scatter_add(msg, idx1) in one kernel."""
    e, f = msg.shape
    te = min(row_tile, _round_up(e, 8))
    ep = _round_up(e, te)
    tc = min(dst_tile, _round_up(dim_size, 8))
    cp = _round_up(dim_size, tc)
    i0 = _pad_rows(idx0.astype(jnp.int32)[:, None], ep, fill=-1)
    i1 = _pad_rows(idx1.astype(jnp.int32)[:, None], ep, fill=-1)
    msg_p = _pad_rows(msg, ep)
    out = pl.pallas_call(
        _bidir_scatter_kernel,
        out_shape=jax.ShapeDtypeStruct((cp, f), out_dtype),
        grid=(cp // tc, ep // te),
        in_specs=[pl.BlockSpec((te, 1), lambda c, r: (r, 0)),
                  pl.BlockSpec((te, 1), lambda c, r: (r, 0)),
                  pl.BlockSpec((te, f), lambda c, r: (r, 0))],
        out_specs=pl.BlockSpec((tc, f), lambda c, r: (c, 0)),
        scratch_shapes=[pltpu.VMEM((tc, f), jnp.float32)],
        compiler_params=_cp(("parallel", "arbitrary")),
    )(i0, i1, msg_p)
    return out[:dim_size]


# ----------------------------------------------------------------------------
# Row-tiled similarity / row-dot / cluster-means / edge-weight kernels
# ----------------------------------------------------------------------------
def _similarity_kernel(a_ref, b_ref, o_ref):
    o_ref[...] = jax.lax.dot_general(
        a_ref[...], b_ref[...], (((1,), (1,)), ((), ())),
        preferred_element_type=jnp.float32)


def pallas_similarity(a, b, row_tile=1024):
    """A @ B^T, tiled over A's rows (B stays resident; no transpose copy)."""
    # TODO(synk): also tile B's rows if the destination set ever gets huge.
    ns, d = a.shape
    nd = b.shape[0]
    tm = min(row_tile, _round_up(ns, 8))
    ns_p = _round_up(ns, tm)
    a_p = _pad_rows(a.astype(jnp.float32), ns_p)
    out = pl.pallas_call(
        _similarity_kernel,
        out_shape=jax.ShapeDtypeStruct((ns_p, nd), jnp.float32),
        grid=(ns_p // tm,),
        in_specs=[pl.BlockSpec((tm, d), lambda i: (i, 0)),
                  pl.BlockSpec((nd, d), lambda i: (0, 0))],
        out_specs=pl.BlockSpec((tm, nd), lambda i: (i, 0)),
        compiler_params=_cp(("parallel",)),
    )(a_p, b.astype(jnp.float32))
    return out[:ns]


def _rowdot_kernel(a_ref, b_ref, o_ref):
    o_ref[...] = jnp.sum(a_ref[...] * b_ref[...], axis=-1, keepdims=True)


def pallas_rowdot(a, b, row_tile=1024):
    e, d = a.shape
    te = min(row_tile, _round_up(e, 8))
    ep = _round_up(e, te)
    a_p = _pad_rows(a.astype(jnp.float32), ep)
    b_p = _pad_rows(b.astype(jnp.float32), ep)
    out = pl.pallas_call(
        _rowdot_kernel,
        out_shape=jax.ShapeDtypeStruct((ep, 1), jnp.float32),
        grid=(ep // te,),
        in_specs=[pl.BlockSpec((te, d), lambda i: (i, 0)),
                  pl.BlockSpec((te, d), lambda i: (i, 0))],
        out_specs=pl.BlockSpec((te, 1), lambda i: (i, 0)),
        compiler_params=_cp(("parallel",)),
    )(a_p, b_p)
    return out[:e]


def _cluster_means_kernel(emb_ref, idx_ref, o_ref, sum_ref, cnt_ref):
    @pl.when(pl.program_id(0) == 0)
    def _init():
        sum_ref[...] = jnp.zeros_like(sum_ref)
        cnt_ref[...] = jnp.zeros_like(cnt_ref)

    n = emb_ref.shape[0]
    c = sum_ref.shape[0]
    iota = jax.lax.broadcasted_iota(jnp.int32, (n, c), 1)
    onehot = (idx_ref[...] == iota).astype(jnp.float32)   # cluster -1 drops out
    sum_ref[...] += jax.lax.dot_general(
        onehot, emb_ref[...], (((0,), (0,)), ((), ())),
        preferred_element_type=jnp.float32)
    cnt_ref[...] += jax.lax.dot_general(
        onehot, jnp.ones((n, 1), jnp.float32), (((0,), (0,)), ((), ())),
        preferred_element_type=jnp.float32)

    @pl.when(pl.program_id(0) == pl.num_programs(0) - 1)
    def _fin():
        means = sum_ref[...] * pl.reciprocal(jnp.maximum(cnt_ref[...], 1.0),
                                             approx=True)
        ss = jnp.sum(means * means, axis=-1, keepdims=True)
        o_ref[...] = means * jax.lax.rsqrt(jnp.maximum(ss, 1e-24))


def pallas_cluster_means(embeddings, clusters, n_clusters, row_tile=1024):
    """normalize(scatter_mean(embeddings, clusters)) — N-tiled, one kernel."""
    n, f = embeddings.shape
    tm = min(row_tile, _round_up(n, 8))
    n_p = _round_up(n, tm)
    emb_p = _pad_rows(embeddings.astype(jnp.float32), n_p)
    idx_p = _pad_rows(clusters.astype(jnp.int32)[:, None], n_p, fill=-1)
    return pl.pallas_call(
        _cluster_means_kernel,
        out_shape=jax.ShapeDtypeStruct((n_clusters, f), jnp.float32),
        grid=(n_p // tm,),
        in_specs=[pl.BlockSpec((tm, f), lambda i: (i, 0)),
                  pl.BlockSpec((tm, 1), lambda i: (i, 0))],
        out_specs=pl.BlockSpec((n_clusters, f), lambda i: (0, 0)),
        scratch_shapes=[pltpu.VMEM((n_clusters, f), jnp.float32),
                        pltpu.VMEM((n_clusters, 1), jnp.float32)],
        compiler_params=_cp(("arbitrary",)),
    )(emb_p, idx_p)


# --- edge weights: rowdot -> standardize -> sigmoid/exp -> dest-normalize ----
def _ew_stats_kernel(src_ref, dst_ref, lik_ref, s_ref, s2_ref, mx_ref, *, e_actual):
    @pl.when(pl.program_id(0) == 0)
    def _init():
        s_ref[...] = jnp.zeros_like(s_ref)
        s2_ref[...] = jnp.zeros_like(s2_ref)
        mx_ref[...] = jnp.full_like(mx_ref, -1e30)

    lik = jnp.sum(src_ref[...] * dst_ref[...], axis=-1, keepdims=True)
    lik_ref[...] = lik
    te = lik.shape[0]
    row = pl.program_id(0) * te + jax.lax.broadcasted_iota(jnp.int32, (te, 1), 0)
    valid = row < e_actual
    lz = jnp.where(valid, lik, 0.0)
    s_ref[...] += jnp.sum(lz, axis=0, keepdims=True)
    s2_ref[...] += jnp.sum(lz * lz, axis=0, keepdims=True)
    mx_ref[...] = jnp.maximum(mx_ref[...],
                              jnp.max(jnp.where(valid, lik, -1e30),
                                      axis=0, keepdims=True))


def _ew_weight_kernel(lik_ref, idx_ref, s_ref, s2_ref, mx_ref, w_ref, dsum_ref,
                      *, e_actual, weighting, norm):
    @pl.when(pl.program_id(0) == 0)
    def _init():
        dsum_ref[...] = jnp.zeros_like(dsum_ref)

    # TODO(synk): PyTorch BatchNorm1d(eval) uses running stats + affine; batch
    # standardization without affine is used here (DynamicGraphConstruction
    # source not provided).
    inv_e = 1.0 / float(e_actual)
    mu = s_ref[...] * inv_e
    var = jnp.maximum(s2_ref[...] * inv_e - mu * mu, 0.0)
    inv_std = jax.lax.rsqrt(var + 1e-5)
    logits = (lik_ref[...] - mu) * inv_std
    if weighting == "sigmoid":
        w = jax.nn.sigmoid(logits)
    else:
        if norm:
            # max-shift cancels exactly in the destination normalization
            logits = logits - (mx_ref[...] - mu) * inv_std
        w = jnp.exp(logits)
    w_ref[...] = w
    if norm:
        te = logits.shape[0]
        nd = dsum_ref.shape[0]
        iota = jax.lax.broadcasted_iota(jnp.int32, (te, nd), 1)
        onehot = (idx_ref[...] == iota).astype(jnp.float32)  # padded idx=-1 -> 0
        dsum_ref[...] += jax.lax.dot_general(
            onehot, w, (((0,), (0,)), ((), ())), preferred_element_type=jnp.float32)


def _ew_norm_kernel(w_ref, idx_ref, dsum_ref, o_ref):
    # TODO(synk): replace the per-tile one-hot denominator lookup with a DMA/row
    # gather if the destination count ever gets large.
    te = w_ref.shape[0]
    nd = dsum_ref.shape[0]
    iota = jax.lax.broadcasted_iota(jnp.int32, (te, nd), 1)
    onehot = (idx_ref[...] == iota).astype(jnp.float32)
    denom = jax.lax.dot_general(
        onehot, dsum_ref[...], (((1,), (0,)), ((), ())),
        preferred_element_type=jnp.float32)
    o_ref[...] = w_ref[...] * pl.reciprocal(jnp.maximum(denom, 1e-12), approx=True)


def pallas_edge_weights(src_rows, dst_rows, dst_idx, nd, *, weighting, norm,
                        row_tile=1024):
    e, d = src_rows.shape
    te = min(row_tile, _round_up(e, 8))
    ep = _round_up(e, te)
    src_p = _pad_rows(src_rows.astype(jnp.float32), ep)
    dst_p = _pad_rows(dst_rows.astype(jnp.float32), ep)
    idx_p = _pad_rows(dst_idx.astype(jnp.int32)[:, None], ep, fill=-1)
    one = jax.ShapeDtypeStruct((1, 1), jnp.float32)
    one_spec = pl.BlockSpec((1, 1), lambda i: (0, 0))

    lik, s, s2, mx = pl.pallas_call(
        functools.partial(_ew_stats_kernel, e_actual=e),
        out_shape=(jax.ShapeDtypeStruct((ep, 1), jnp.float32), one, one, one),
        grid=(ep // te,),
        in_specs=[pl.BlockSpec((te, d), lambda i: (i, 0)),
                  pl.BlockSpec((te, d), lambda i: (i, 0))],
        out_specs=(pl.BlockSpec((te, 1), lambda i: (i, 0)),
                   one_spec, one_spec, one_spec),
        compiler_params=_cp(("arbitrary",)),
    )(src_p, dst_p)

    w, dsum = pl.pallas_call(
        functools.partial(_ew_weight_kernel, e_actual=e,
                          weighting=weighting, norm=norm),
        out_shape=(jax.ShapeDtypeStruct((ep, 1), jnp.float32),
                   jax.ShapeDtypeStruct((nd, 1), jnp.float32)),
        grid=(ep // te,),
        in_specs=[pl.BlockSpec((te, 1), lambda i: (i, 0)),
                  pl.BlockSpec((te, 1), lambda i: (i, 0)),
                  one_spec, one_spec, one_spec],
        out_specs=(pl.BlockSpec((te, 1), lambda i: (i, 0)),
                   pl.BlockSpec((nd, 1), lambda i: (0, 0))),
        compiler_params=_cp(("arbitrary",)),
    )(lik, idx_p, s, s2, mx)

    if not norm:
        return w[:e]

    w_n = pl.pallas_call(
        _ew_norm_kernel,
        out_shape=jax.ShapeDtypeStruct((ep, 1), jnp.float32),
        grid=(ep // te,),
        in_specs=[pl.BlockSpec((te, 1), lambda i: (i, 0)),
                  pl.BlockSpec((te, 1), lambda i: (i, 0)),
                  pl.BlockSpec((nd, 1), lambda i: (0, 0))],
        out_specs=pl.BlockSpec((te, 1), lambda i: (i, 0)),
        compiler_params=_cp(("parallel",)),
    )(w, idx_p, dsum)
    return w_n[:e]


# ----------------------------------------------------------------------------
# Parameters (PyTorch-Linear-like init; weights stored bf16 for the MXU path)
# ----------------------------------------------------------------------------
def make_mlp_params(key, d_in, d_hidden, d_out, n_layers):
    sizes = [d_in] + [d_hidden] * (n_layers - 1) + [d_out]
    params = []
    for i in range(n_layers):
        key, k1, k2 = jax.random.split(key, 3)
        bound = 1.0 / np.sqrt(sizes[i])
        w = jax.random.uniform(k1, (sizes[i], sizes[i + 1]), jnp.float32,
                               -bound, bound).astype(jnp.bfloat16)
        b = jax.random.uniform(k2, (1, sizes[i + 1]), jnp.float32, -bound, bound)
        g = jnp.ones((1, sizes[i + 1]), jnp.float32)
        bt = jnp.zeros((1, sizes[i + 1]), jnp.float32)
        params.append((w, b, g, bt))
    return params


def make_cell_params(key, hp):
    latent, hidden = hp["latent"], hp["hidden"]
    keys = jax.random.split(key, 4)
    return dict(
        edge_net=make_mlp_params(keys[0], 3 * latent, hidden, latent, hp["nb_edge_layer"]),
        node_net=make_mlp_params(keys[1], 3 * latent, hidden, latent, hp["nb_node_layer"]),
        superedge_net=make_mlp_params(keys[2], 3 * latent, hidden, latent, hp["nb_edge_layer"]),
        supernode_net=make_mlp_params(keys[3], 3 * latent, hidden, latent, hp["nb_node_layer"]),
    )


def init_params(key, hp):
    latent, hidden, emb_dim = hp["latent"], hp["hidden"], hp["emb_dim"]
    keys = jax.random.split(key, 4 + hp["n_hierarchical_graph_iters"])
    params = {
        "supernode_encoder": make_mlp_params(keys[0], latent, hidden,
                                             latent - emb_dim, hp["nb_node_layer"]),
        "superedge_encoder": make_mlp_params(keys[1], 2 * latent, hidden, latent,
                                             hp["nb_edge_layer"]),
        "output_layer": make_mlp_params(keys[2], latent, hidden, emb_dim,
                                        hp["output_layers"]),
    }
    if hp["share_weight"]:
        cell = make_cell_params(keys[3], hp)
        params["hgnn_cells"] = [cell] * hp["n_hierarchical_graph_iters"]
    else:
        params["hgnn_cells"] = [make_cell_params(keys[3 + i], hp)
                                for i in range(hp["n_hierarchical_graph_iters"])]
    return params


# ----------------------------------------------------------------------------
# Model pieces
# ----------------------------------------------------------------------------
def clustering(embeddings, graph, hp, score_cut=0.0):
    """edge likelihood (Pallas) -> threshold -> connected components (host)."""
    # TODO(synk): GMM fit + fsolve score-cut and cugraph connected components have no
    # Pallas equivalent; fixed score_cut and host-side min-label propagation used.
    lik = pallas_rowdot(embeddings[graph[0]], embeddings[graph[1]])[:, 0]
    lik = jnp.arctanh(jnp.clip(lik, -1.0 + 1e-7, 1.0 - 1e-7))
    mask = np.asarray(lik >= score_cut)
    n = embeddings.shape[0]
    src = np.asarray(graph[0])[mask]
    dst = np.asarray(graph[1])[mask]
    labels = np.arange(n)
    for _ in range(n):
        old = labels.copy()
        np.minimum.at(labels, dst, labels[src])
        np.minimum.at(labels, src, labels[dst])
        labels = labels[labels]
        if np.array_equal(labels, old):
            break
    counts = np.bincount(labels, minlength=n)
    valid = counts[labels] >= hp["min_cluster_size"]
    clusters = -np.ones(n, dtype=np.int32)
    if valid.any():
        _, inv = np.unique(labels[valid], return_inverse=True)
        clusters[valid] = inv.astype(np.int32)
    n_clusters = max(int(clusters.max()) + 1, 1)
    return jnp.asarray(clusters), n_clusters


def dynamic_graph_construction(src_emb, dst_emb, *, weighting, sym, norm, k):
    """kNN graph + (sigmoid|exp) edge weights normalized over destinations."""
    # TODO(synk): DynamicGraphConstruction source not provided; kNN + BN-standardized
    # weighting reconstructed from its usage.
    ns, nd = src_emb.shape[0], dst_emb.shape[0]
    k_eff = min(k, nd)
    sim = pallas_similarity(src_emb, dst_emb)                    # [Ns, Nd]
    _, nbr = jax.lax.top_k(sim, k_eff)
    src = jnp.repeat(jnp.arange(ns, dtype=jnp.int32), k_eff)
    dst = nbr.reshape(-1).astype(jnp.int32)
    if sym:
        src, dst = jnp.concatenate([src, dst]), jnp.concatenate([dst, src])
    graph = jnp.stack([src, dst])
    w = pallas_edge_weights(src_emb[graph[0]], dst_emb[graph[1]], graph[1], nd,
                            weighting=weighting, norm=norm)
    return graph, w


def apply_cell(p, nodes, edges, supernodes, superedges,
               graph, bgraph, bweights, sgraph, sweights, hp):
    """Hierarchical GNN cell (interaction-network style, residual updates)."""
    # TODO(synk): HierarchicalGNNCell source not provided; residual IN-style updates
    # (edge/node/superedge/supernode MLPs + weighted scatter aggregation) reconstructed.
    n, c = nodes.shape[0], supernodes.shape[0]
    ln = hp["layernorm"]

    # node update (edge aggregation + supernode->node message, gather fused)
    edge_msg = pallas_scatter_bidir(edges, graph[0], graph[1], n)
    super_to_node = pallas_gather_scatter(supernodes, bgraph[1], bgraph[0],
                                          bweights, n)
    nodes_new = fused_mlp([nodes, edge_msg, super_to_node], p["node_net"],
                          ln=ln, out_act=True, residual=nodes,
                          out_dtype=jnp.bfloat16)

    # supernode update
    sedge_msg = pallas_weighted_scatter(sgraph[1], superedges, sweights, c)
    node_to_super = pallas_gather_scatter(nodes, bgraph[0], bgraph[1],
                                          bweights, c)
    supernodes_new = fused_mlp([supernodes, sedge_msg, node_to_super],
                               p["supernode_net"], ln=ln, out_act=True,
                               residual=supernodes, out_dtype=jnp.bfloat16)

    # edge update
    edges_new = fused_mlp([nodes_new[graph[0]], nodes_new[graph[1]], edges],
                          p["edge_net"], ln=ln, out_act=True, residual=edges,
                          out_dtype=jnp.bfloat16)

    # superedge update
    superedges_new = fused_mlp([supernodes_new[sgraph[0]],
                                supernodes_new[sgraph[1]], superedges],
                               p["superedge_net"], ln=ln, out_act=True,
                               residual=superedges, out_dtype=jnp.bfloat16)
    return nodes_new, edges_new, supernodes_new, superedges_new


@functools.partial(jax.jit, static_argnums=(0, 1))
def _forward_core(hp_items, n_clusters, params, embeddings, nodes, edges,
                  graph, clusters):
    hp = dict(hp_items)
    ln = hp["layernorm"]

    # cluster means = normalize(scatter_mean(embeddings, clusters))  (one kernel)
    means = pallas_cluster_means(embeddings, clusters, n_clusters)

    # dynamic graph construction
    sgraph, sweights = dynamic_graph_construction(
        means, means, weighting="sigmoid", sym=True, norm=True,
        k=hp["supergraph_sparsity"])
    bgraph, bweights = dynamic_graph_construction(
        embeddings, means, weighting="exp", sym=False, norm=True,
        k=hp["bipartitegraph_sparsity"])

    # supernodes / superedges (gather of nodes fused into the scatter kernel)
    supernode_agg = pallas_gather_scatter(nodes, bgraph[0], bgraph[1],
                                          bweights, n_clusters)
    enc = fused_mlp([supernode_agg], params["supernode_encoder"],
                    ln=ln, out_act=True, out_dtype=jnp.bfloat16)
    supernodes = jnp.concatenate([means.astype(jnp.bfloat16), enc], axis=-1)
    superedges = fused_mlp([supernodes[sgraph[0]], supernodes[sgraph[1]]],
                           params["superedge_encoder"], ln=ln, out_act=True,
                           out_dtype=jnp.bfloat16)

    # hierarchical GNN cells
    for cell in params["hgnn_cells"]:
        nodes, edges, supernodes, superedges = apply_cell(
            cell, nodes, edges, supernodes, superedges,
            graph, bgraph, bweights, sgraph, sweights, hp)

    # output embeddings (final MLP + fused L2-normalize, f32)
    emb_out = fused_mlp([nodes], params["output_layer"], ln=ln, out_act=False,
                        l2_out=True, out_dtype=jnp.float32)
    return emb_out


def hierarchical_gnn_block_forward(params, hp, x, embeddings, nodes, edges, graph):
    clusters, n_clusters = clustering(embeddings, graph, hp)
    hp_items = tuple(sorted(hp.items()))
    emb_out = _forward_core(hp_items, n_clusters, params, embeddings, nodes,
                            edges, graph, clusters)
    return emb_out, clusters


# ----------------------------------------------------------------------------
# Main
# ----------------------------------------------------------------------------
if __name__ == "__main__":
    hp = dict(
        latent=32, hidden=32, emb_dim=8,
        nb_node_layer=2, nb_edge_layer=2,
        n_hierarchical_graph_iters=2, output_layers=2,
        layernorm=True, hidden_activation="ReLU", hidden_output_activation="ReLU",
        share_weight=False,
        supergraph_sparsity=3, bipartitegraph_sparsity=3,
        min_cluster_size=2, cluster_granularity=0.0,
    )

    key = jax.random.PRNGKey(0)
    k_param, k_x, k_emb, k_nodes, k_edges, k_graph = jax.random.split(key, 6)

    N, E = 64, 128
    params = init_params(k_param, hp)

    x = jax.random.normal(k_x, (N, 3), jnp.float32)
    embeddings = jax.random.normal(k_emb, (N, hp["emb_dim"]), jnp.float32)
    embeddings = embeddings / jnp.linalg.norm(embeddings, axis=-1, keepdims=True)
    nodes = jax.random.normal(k_nodes, (N, hp["latent"]), jnp.float32)
    edges = jax.random.normal(k_edges, (E, hp["latent"]), jnp.float32)
    graph = jax.random.randint(k_graph, (2, E), 0, N, dtype=jnp.int32)

    emb_out, clusters = hierarchical_gnn_block_forward(
        params, hp, x, embeddings, nodes, edges, graph)
    jax.block_until_ready(emb_out)
    jax.block_until_ready(clusters)

    assert emb_out.shape == (N, hp["emb_dim"])
    assert clusters.shape == (N,)
    assert bool(jnp.all(jnp.isfinite(emb_out)))
    print("KERNEL_OK")
</pallas_src>

<mosaic_0001>
module attributes {stable_mosaic.version = 11 : i64} {
  func.func @_rowdot_kernel(%arg0: i32, %arg1: memref<128x8xf32, #tpu.memory_space<vmem>>, %arg2: memref<128x8xf32, #tpu.memory_space<vmem>>, %arg3: memref<128x1xf32, #tpu.memory_space<vmem>>) attributes {dimension_semantics = [#tpu.dimension_semantics<parallel>], iteration_bounds = array<i64: 1>, scalar_prefetch = 0 : i64, scratch_operands = 0 : i64, tpu.core_type = #tpu.core_type<tc>, window_params = [{transform_indices = @transform_0, window_bounds = array<i64: 128, 8>}, {transform_indices = @transform_1, window_bounds = array<i64: 128, 8>}, {transform_indices = @transform_2, window_bounds = array<i64: 128, 1>}]} {
    %c0 = arith.constant 0 : index
    %c0_0 = arith.constant 0 : index
    %0 = vector.load %arg1[%c0, %c0_0] : memref<128x8xf32, #tpu.memory_space<vmem>>, vector<128x8xf32>
    %c0_1 = arith.constant 0 : index
    %c0_2 = arith.constant 0 : index
    %1 = vector.load %arg2[%c0_1, %c0_2] : memref<128x8xf32, #tpu.memory_space<vmem>>, vector<128x8xf32>
    %2 = arith.mulf %0, %1 : vector<128x8xf32>
    %cst = arith.constant dense<0.000000e+00> : vector<128xf32>
    %3 = vector.multi_reduction <add>, %2, %cst [1] : vector<128x8xf32> to vector<128xf32>
    %4 = vector.shape_cast %3 : vector<128xf32> to vector<128x1xf32>
    %c0_3 = arith.constant 0 : index
    %c0_4 = arith.constant 0 : index
    %5 = vector.load %arg3[%c0_3, %c0_4] : memref<128x1xf32, #tpu.memory_space<vmem>>, vector<128x1xf32>
    tpu.vector_store %arg3[%c0_3, %c0_4], %4 {strides = array<i32>} : memref<128x1xf32, #tpu.memory_space<vmem>>, vector<128x1xf32>,
    return
  }
  func.func @transform_0(%arg0: i32) -> (i32, i32) {
    %c0_i32 = arith.constant 0 : i32
    %c0_i32_0 = arith.constant 0 : i32
    return %arg0, %c0_i32 : i32, i32
  }
  func.func @transform_1(%arg0: i32) -> (i32, i32) {
    %c0_i32 = arith.constant 0 : i32
    %c0_i32_0 = arith.constant 0 : i32
    return %arg0, %c0_i32 : i32, i32
  }
  func.func @transform_2(%arg0: i32) -> (i32, i32) {
    %c0_i32 = arith.constant 0 : i32
    %c0_i32_0 = arith.constant 0 : i32
    return %arg0, %c0_i32 : i32, i32
  }
}

</mosaic_0001>

<llo_original>
// kernel: tpu_custom_call.1
$region0: #{tpu_custom_call.1}
  #allocation0 [shape = 'u32[]', space=smem, size = 0x4, offset = 0x4, fixed_abs, tag = 'smem constant byte address 0x4 - core index']
  #allocation1 [shape = 'u32[144,128]{1,0:T(1,128)}', space=vmem, size = 0x12000, scoped, tag = 'internal scratch']
  %s0 = inlined_call_operand.vmem [shape: f32[128,8], index: 0, kind: input, shape index: {}]
  %s1 = inlined_call_operand.vmem [shape: f32[128,8], index: 1, kind: input, shape index: {}]
  %s2 = inlined_call_operand.vmem [shape: f32[128,1], index: 2, kind: output, shape index: {}]
  %s3 = sld [smem:[#allocation0]]
  $region18: #{tpu_custom_call.1} parent=0
    _
  %s5 = ssub.s32 1, %s3
  %s6 = scalar_select 0, %s5, %s3
  // Predicated region
  $region2: #{tpu_custom_call.1} parent=0 // pred_check
    _
  $region3: #{tpu_custom_call.1} parent=0 // pred_check_branch
    %8 = sbr.rel (0) target = $region5
  $region4: #{tpu_custom_call.1} parent=0 // pred_region
    _
  $region5: #{tpu_custom_call.1} parent=0 // pred_fallthru
    _
  // Predicated region
  $region6: #{tpu_custom_call.1} parent=0 // pred_check
    _
  $region7: #{tpu_custom_call.1} parent=0 // pred_check_branch
    %10 = sbr.rel (0) target = $region9
  $region8: #{tpu_custom_call.1} parent=0 // pred_region
    _
  $region9: #{tpu_custom_call.1} parent=0 // pred_fallthru
    _
  %v11 = vld [vmem:[%s0] sm:$0xff]
  %v12 = vld [vmem:[%s0 + $0x8] sm:$0xff]
  %v13 = vld [vmem:[%s0 + $0x10] sm:$0xff]
  %v14 = vld [vmem:[%s0 + $0x18] sm:$0xff]
  %v15 = vld [vmem:[%s0 + $0x20] sm:$0xff]
  %v16 = vld [vmem:[%s0 + $0x28] sm:$0xff]
  %v17 = vld [vmem:[%s0 + $0x30] sm:$0xff]
  %v18 = vld [vmem:[%s0 + $0x38] sm:$0xff]
  %v19 = vld [vmem:[%s0 + $0x40] sm:$0xff]
  %v20 = vld [vmem:[%s0 + $0x48] sm:$0xff]
  %v21 = vld [vmem:[%s0 + $0x50] sm:$0xff]
  %v22 = vld [vmem:[%s0 + $0x58] sm:$0xff]
  %v23 = vld [vmem:[%s0 + $0x60] sm:$0xff]
  %v24 = vld [vmem:[%s0 + $0x68] sm:$0xff]
  %v25 = vld [vmem:[%s0 + $0x70] sm:$0xff]
  %v26 = vld [vmem:[%s0 + $0x78] sm:$0xff]
  %v27 = vld [vmem:[%s1] sm:$0xff]
  %v28 = vld [vmem:[%s1 + $0x8] sm:$0xff]
  %v29 = vld [vmem:[%s1 + $0x10] sm:$0xff]
  %v30 = vld [vmem:[%s1 + $0x18] sm:$0xff]
  %v31 = vld [vmem:[%s1 + $0x20] sm:$0xff]
  %v32 = vld [vmem:[%s1 + $0x28] sm:$0xff]
  %v33 = vld [vmem:[%s1 + $0x30] sm:$0xff]
  %v34 = vld [vmem:[%s1 + $0x38] sm:$0xff]
  %v35 = vld [vmem:[%s1 + $0x40] sm:$0xff]
  %v36 = vld [vmem:[%s1 + $0x48] sm:$0xff]
  %v37 = vld [vmem:[%s1 + $0x50] sm:$0xff]
  %v38 = vld [vmem:[%s1 + $0x58] sm:$0xff]
  %v39 = vld [vmem:[%s1 + $0x60] sm:$0xff]
  %v40 = vld [vmem:[%s1 + $0x68] sm:$0xff]
  %v41 = vld [vmem:[%s1 + $0x70] sm:$0xff]
  %v42 = vld [vmem:[%s1 + $0x78] sm:$0xff]
  %v43 = vmul.f32 %v11, %v27
  %v44 = vmul.f32 %v12, %v28
  %v45 = vmul.f32 %v13, %v29
  %v46 = vmul.f32 %v14, %v30
  %v47 = vmul.f32 %v15, %v31
  %v48 = vmul.f32 %v16, %v32
  %v49 = vmul.f32 %v17, %v33
  %v50 = vmul.f32 %v18, %v34
  %v51 = vmul.f32 %v19, %v35
  %v52 = vmul.f32 %v20, %v36
  %v53 = vmul.f32 %v21, %v37
  %v54 = vmul.f32 %v22, %v38
  %v55 = vmul.f32 %v23, %v39
  %v56 = vmul.f32 %v24, %v40
  %v57 = vmul.f32 %v25, %v41
  %v58 = vmul.f32 %v26, %v42
  %vm59 = vcmask 64512
  %v60 = vsel %vm59, %v43, 0.0
  %61 = vadd.xlane.f32.xlu0 %v60
  %v62 = vpop.xlane.xlu0 %61
  %v63 = vsel %vm59, %v44, 0.0
  %64 = vadd.xlane.f32.xlu0 %v63
  %v65 = vpop.xlane.xlu0 %64
  %v66 = vsel %vm59, %v45, 0.0
  %67 = vadd.xlane.f32.xlu0 %v66
  %v68 = vpop.xlane.xlu0 %67
  %v69 = vsel %vm59, %v46, 0.0
  %70 = vadd.xlane.f32.xlu0 %v69
  %v71 = vpop.xlane.xlu0 %70
  %v72 = vsel %vm59, %v47, 0.0
  %73 = vadd.xlane.f32.xlu0 %v72
  %v74 = vpop.xlane.xlu0 %73
  %v75 = vsel %vm59, %v48, 0.0
  %76 = vadd.xlane.f32.xlu0 %v75
  %v77 = vpop.xlane.xlu0 %76
  %v78 = vsel %vm59, %v49, 0.0
  %79 = vadd.xlane.f32.xlu0 %v78
  %v80 = vpop.xlane.xlu0 %79
  %v81 = vsel %vm59, %v50, 0.0
  %82 = vadd.xlane.f32.xlu0 %v81
  %v83 = vpop.xlane.xlu0 %82
  %v84 = vsel %vm59, %v51, 0.0
  %85 = vadd.xlane.f32.xlu0 %v84
  %v86 = vpop.xlane.xlu0 %85
  %v87 = vsel %vm59, %v52, 0.0
  %88 = vadd.xlane.f32.xlu0 %v87
  %v89 = vpop.xlane.xlu0 %88
  %v90 = vsel %vm59, %v53, 0.0
  %91 = vadd.xlane.f32.xlu0 %v90
  %v92 = vpop.xlane.xlu0 %91
  %v93 = vsel %vm59, %v54, 0.0
  %94 = vadd.xlane.f32.xlu0 %v93
  %v95 = vpop.xlane.xlu0 %94
  %v96 = vsel %vm59, %v55, 0.0
  %97 = vadd.xlane.f32.xlu0 %v96
  %v98 = vpop.xlane.xlu0 %97
  %v99 = vsel %vm59, %v56, 0.0
  %100 = vadd.xlane.f32.xlu0 %v99
  %v101 = vpop.xlane.xlu0 %100
  %v102 = vsel %vm59, %v57, 0.0
  %103 = vadd.xlane.f32.xlu0 %v102
  %v104 = vpop.xlane.xlu0 %103
  %v105 = vsel %vm59, %v58, 0.0
  %106 = vadd.xlane.f32.xlu0 %v105
  %v107 = vpop.xlane.xlu0 %106
  %vm108 = vcmask 7168
  %109 = vst.msk [vmem:[%s2] sm:$0xff] %vm108, %v62
  %110 = vst.msk [vmem:[%s2 + $0x8] sm:$0xff] %vm108, %v65
  %111 = vst.msk [vmem:[%s2 + $0x10] sm:$0xff] %vm108, %v68
  %112 = vst.msk [vmem:[%s2 + $0x18] sm:$0xff] %vm108, %v71
  %113 = vst.msk [vmem:[%s2 + $0x20] sm:$0xff] %vm108, %v74
  %114 = vst.msk [vmem:[%s2 + $0x28] sm:$0xff] %vm108, %v77
  %115 = vst.msk [vmem:[%s2 + $0x30] sm:$0xff] %vm108, %v80
  %116 = vst.msk [vmem:[%s2 + $0x38] sm:$0xff] %vm108, %v83
  %117 = vst.msk [vmem:[%s2 + $0x40] sm:$0xff] %vm108, %v86
  %118 = vst.msk [vmem:[%s2 + $0x48] sm:$0xff] %vm108, %v89
  %119 = vst.msk [vmem:[%s2 + $0x50] sm:$0xff] %vm108, %v92
  %120 = vst.msk [vmem:[%s2 + $0x58] sm:$0xff] %vm108, %v95
  %121 = vst.msk [vmem:[%s2 + $0x60] sm:$0xff] %vm108, %v98
  %122 = vst.msk [vmem:[%s2 + $0x68] sm:$0xff] %vm108, %v101
  %123 = vst.msk [vmem:[%s2 + $0x70] sm:$0xff] %vm108, %v104
  %124 = vst.msk [vmem:[%s2 + $0x78] sm:$0xff] %vm108, %v107
  // Predicated region
  $region10: #{tpu_custom_call.1} parent=0 // pred_check
    _
  $region11: #{tpu_custom_call.1} parent=0 // pred_check_branch
    %126 = sbr.rel (0) target = $region13
  $region12: #{tpu_custom_call.1} parent=0 // pred_region
    _
  $region13: #{tpu_custom_call.1} parent=0 // pred_fallthru
    _
  // Predicated region
  $region14: #{tpu_custom_call.1} parent=0 // pred_check
    _
  $region15: #{tpu_custom_call.1} parent=0 // pred_check_branch
    %128 = sbr.rel (0) target = $region17
  $region16: #{tpu_custom_call.1} parent=0 // pred_region
    _
  $region17: #{tpu_custom_call.1} parent=0 // pred_fallthru
    _

</llo_original>
